<compile_context>
chip_gen: v5e
topology: v5e:2x2
jax: 0.10.0
libtpu: 0.0.40
codegen_flags: <defaults>
</compile_context>

<pallas_src>
import functools

import jax
import jax.numpy as jnp
import numpy as np
from jax.experimental import pallas as pl
from jax.experimental.pallas import tpu as pltpu

LANE = 128
SUBLANE = 8


# ------------------------------ small helpers --------------------------------

def _round_up(x, m):
    return (x + m - 1) // m * m


def _pad_last(a, target):
    pad = target - a.shape[-1]
    if pad == 0:
        return a
    cfg = [(0, 0)] * (a.ndim - 1) + [(0, pad)]
    return jnp.pad(a, cfg)


def _fold_bn(gamma, beta, mean, var, eps=1e-5):
    scale = gamma / jnp.sqrt(var + eps)
    shift = beta - mean * scale
    return scale, shift


def _vmem_limits():
    """Per-generation VMEM limit + block budget (v5e/v6e: 128 MiB, v7x: 64 MiB)."""
    try:
        cap = int(pltpu.get_tpu_info().vmem_capacity_bytes)
    except Exception:
        cap = 64 * 1024 * 1024          # conservative (v7x-sized) fallback
    limit = min(cap * 3 // 4, 96 * 1024 * 1024)
    return limit, int(limit * 0.6)


def _spec(shape, index_map, buffers=None):
    """BlockSpec helper: optionally request a custom buffer count (e.g. 1 for
    grid-invariant weights) when the installed Pallas supports pipeline_mode."""
    if buffers is not None:
        try:
            return pl.BlockSpec(shape, index_map,
                                pipeline_mode=pl.Buffered(buffers))
        except Exception:
            pass
    return pl.BlockSpec(shape, index_map)


# ------------------- flat padded-image ("FP") layout helpers ------------------
#
# FP layout: the NHWC image with a 1-pixel zero border, flattened row-major to
# (N, rows, Cpad).  A stride-1 3x3 conv output "phantom" row p = i*Wp + j
# (j in [0, Wp) incl. 2 phantom columns) only needs taps at FP rows p + kh*Wp + kw
# -> 9 shifted contiguous windows -> 9 in-kernel matmuls, no im2col slab.

def _fp_pack(img, cp):
    """NHWC image -> FP buffer (N, Mp, cp); also returns (Wp, Mo)."""
    n, hi, wi, c = img.shape
    wp = wi + 2
    mo = _round_up(hi * wp, SUBLANE)              # phantom-row count of the conv output
    mp = _round_up(mo + 2 * wp + 2, SUBLANE)      # rows so every tap window is in-bounds
    img = jnp.pad(img, ((0, 0), (1, 1), (1, 1), (0, cp - c)))
    flat = img.reshape(n, (hi + 2) * wp, cp)
    flat = jnp.pad(flat, ((0, 0), (0, mp - (hi + 2) * wp), (0, 0)))
    return flat, wp, mo


def _fp_from_phantom(y, ho, wp):
    """Chain stride-1 convs: a phantom-layout output (phantom rows zeroed
    in-kernel) IS the next conv's FP buffer shifted by wp+1 rows."""
    n, mo_in, cp = y.shape
    mo = _round_up(ho * wp, SUBLANE)
    mp = _round_up(max(mo + 2 * wp + 2, (wp + 1) + mo_in), SUBLANE)
    return jnp.pad(y, ((0, 0), (wp + 1, mp - (wp + 1) - mo_in), (0, 0))), mo


def _phantom_img(img, cp, wp, mo):
    """NHWC image -> phantom-row layout (N, mo, cp): row p = i*wp + j."""
    n, hi, wi, c = img.shape
    a = jnp.pad(img, ((0, 0), (0, 0), (0, wp - wi), (0, cp - c)))
    a = a.reshape(n, hi * wp, cp)
    return jnp.pad(a, ((0, 0), (0, mo - hi * wp), (0, 0)))


def _row_mask(ho, wo, wp, mo):
    """1.0 for rows that are real output pixels, 0.0 for phantom/tail rows."""
    r = np.arange(mo)
    m = ((r < ho * wp) & (r % wp < wo)).astype(np.float32)
    return jnp.asarray(m.reshape(mo, 1))


def _im2col(x_nhwc, K, stride, pad):
    """Slab fallback: contiguous im2col (N, Ho*Wo, K*K*C); tap-major, chan-fastest."""
    N, H, W, C = x_nhwc.shape
    xp = jnp.pad(x_nhwc, ((0, 0), (pad, pad), (pad, pad), (0, 0)))
    Ho = (H + 2 * pad - K) // stride + 1
    Wo = (W + 2 * pad - K) // stride + 1
    cols = []
    for kh in range(K):
        for kw in range(K):
            cols.append(xp[:, kh:kh + (Ho - 1) * stride + 1:stride,
                              kw:kw + (Wo - 1) * stride + 1:stride, :])
    taps = jnp.stack(cols, axis=3)                # (N, Ho, Wo, K*K, C)
    return taps.reshape(N, Ho * Wo, K * K * C), (Ho, Wo)


# ------------------------------ Pallas kernels --------------------------------
# Fused path: 9 shifted-window matmuls, f32 accumulation in VMEM scratch,
# folded-BN bias + ReLU (+ fused residual) epilogue, phantom-row masking.

def _fused_taps_matmul(x_ref, w_ref, acc_ref, offsets, n_rows):
    for idx, off in enumerate(offsets):
        tap = x_ref[pl.ds(off, n_rows), :]                   # static shifted window
        part = jnp.dot(tap, w_ref[idx], preferred_element_type=jnp.float32)
        if idx == 0:
            acc_ref[...] = part
        else:
            acc_ref[...] += part
    return acc_ref[...]


def _fused_epilogue(acc, b_ref, mask_ref, o_ref, relu, extra=None):
    acc = acc + b_ref[...]
    if relu:
        acc = jnp.maximum(acc, 0.0)
    if extra is not None:
        acc = acc + extra
    acc = acc * mask_ref[...]                                # zero phantom rows
    o_ref[...] = acc.astype(o_ref.dtype)


def _fused_conv_kernel(x_ref, w_ref, b_ref, mask_ref, o_ref, acc_ref, *,
                       offsets, n_rows, relu):
    acc = _fused_taps_matmul(x_ref, w_ref, acc_ref, offsets, n_rows)
    _fused_epilogue(acc, b_ref, mask_ref, o_ref, relu)


def _fused_conv_res_mm_kernel(x_ref, w_ref, b_ref, mask_ref, xr_ref, wr_ref,
                              br_ref, o_ref, acc_ref, *, offsets, n_rows, relu):
    acc = _fused_taps_matmul(x_ref, w_ref, acc_ref, offsets, n_rows)
    res = jnp.dot(xr_ref[...], wr_ref[...], preferred_element_type=jnp.float32)
    res = res + br_ref[...]
    _fused_epilogue(acc, b_ref, mask_ref, o_ref, relu, extra=res)


def _fused_conv_res_add_kernel(x_ref, w_ref, b_ref, mask_ref, r_ref, o_ref,
                               acc_ref, *, offsets, n_rows, relu):
    acc = _fused_taps_matmul(x_ref, w_ref, acc_ref, offsets, n_rows)
    _fused_epilogue(acc, b_ref, mask_ref, o_ref, relu,
                    extra=r_ref[...].astype(jnp.float32))


# Slab fallback path: one deep matmul per spatial tile over an im2col slab.

def _slab_conv_kernel(t_ref, w_ref, b_ref, o_ref, *, relu):
    acc = jnp.dot(t_ref[0], w_ref[...], preferred_element_type=jnp.float32)
    acc = acc + b_ref[...]
    if relu:
        acc = jnp.maximum(acc, 0.0)
    o_ref[0] = acc.astype(o_ref.dtype)


def _slab_res_mm_kernel(t_ref, w_ref, b_ref, xr_ref, wr_ref, br_ref, o_ref, *,
                        relu):
    acc = jnp.dot(t_ref[0], w_ref[...], preferred_element_type=jnp.float32)
    acc = acc + b_ref[...]
    if relu:
        acc = jnp.maximum(acc, 0.0)
    res = jnp.dot(xr_ref[0], wr_ref[...], preferred_element_type=jnp.float32)
    res = res + br_ref[...]
    o_ref[0] = (acc + res).astype(o_ref.dtype)


def _slab_res_add_kernel(t_ref, w_ref, b_ref, r_ref, o_ref, *, relu):
    acc = jnp.dot(t_ref[0], w_ref[...], preferred_element_type=jnp.float32)
    acc = acc + b_ref[...]
    if relu:
        acc = jnp.maximum(acc, 0.0)
    o_ref[0] = (acc + r_ref[0].astype(jnp.float32)).astype(o_ref.dtype)


# ------------------------------ pallas_call wrappers ---------------------------

def _fused_fits(mo, mp_in, cin_p, cout_p, out_isz, budget,
                res_row_bytes=0, res_fixed=0):
    need = 2 * mp_in * cin_p * 2            # FP input (bf16, double-buffered)
    need += 9 * cin_p * cout_p * 2          # weights (single-buffered)
    need += 2 * cout_p * 4                  # bias
    need += res_fixed
    need += mo * (2 * cout_p * out_isz      # output (double-buffered)
                  + cout_p * 4              # f32 accumulator scratch
                  + 2 * 4                   # row mask
                  + res_row_bytes)
    return need <= budget


def _conv_fused(x_fp, w9, b, mask, wp, *, relu, out_dtype, limit,
                res_add=None, res_x=None, res_w=None, res_b=None):
    """Stride-1 3x3 conv + folded BN + (ReLU) + fused residual, no im2col slab."""
    N, mp_in, cin_p = x_fp.shape
    cout_p = w9.shape[-1]
    mo = mask.shape[0]
    offsets = tuple(kh * wp + kw for kh in range(3) for kw in range(3))

    in_specs = [
        pl.BlockSpec((None, mp_in, cin_p), lambda n: (n, 0, 0)),
        _spec((9, cin_p, cout_p), lambda n: (0, 0, 0), buffers=1),
        _spec((1, cout_p), lambda n: (0, 0), buffers=1),
        pl.BlockSpec((mo, 1), lambda n: (0, 0)),
    ]
    args = [x_fp, w9, b, mask]
    flops = 2 * N * mo * 9 * cin_p * cout_p

    if res_x is not None:
        cr = res_x.shape[-1]
        kernel = functools.partial(_fused_conv_res_mm_kernel,
                                   offsets=offsets, n_rows=mo, relu=relu)
        in_specs += [
            pl.BlockSpec((None, mo, cr), lambda n: (n, 0, 0)),
            _spec((cr, cout_p), lambda n: (0, 0), buffers=1),
            _spec((1, cout_p), lambda n: (0, 0), buffers=1),
        ]
        args += [res_x, res_w, res_b]
        flops += 2 * N * mo * cr * cout_p
    elif res_add is not None:
        kernel = functools.partial(_fused_conv_res_add_kernel,
                                   offsets=offsets, n_rows=mo, relu=relu)
        in_specs.append(pl.BlockSpec((None, mo, cout_p), lambda n: (n, 0, 0)))
        args.append(res_add)
    else:
        kernel = functools.partial(_fused_conv_kernel,
                                   offsets=offsets, n_rows=mo, relu=relu)

    out_shape = jax.ShapeDtypeStruct((N, mo, cout_p), out_dtype)
    bytes_accessed = sum(int(a.size) * a.dtype.itemsize for a in args)
    bytes_accessed += N * mo * cout_p * np.dtype(out_dtype).itemsize

    return pl.pallas_call(
        kernel,
        grid=(N,),
        in_specs=in_specs,
        out_specs=pl.BlockSpec((None, mo, cout_p), lambda n: (n, 0, 0)),
        out_shape=out_shape,
        scratch_shapes=[pltpu.VMEM((mo, cout_p), jnp.float32)],
        compiler_params=pltpu.CompilerParams(
            dimension_semantics=("parallel",),
            vmem_limit_bytes=limit),
        cost_estimate=pl.CostEstimate(flops=int(flops), transcendentals=0,
                                      bytes_accessed=int(bytes_accessed)),
    )(*args)


def _slab_tile_m(hw8, kkc, cp, *, budget, n_batch, out_isz,
                 res_row_bytes=0, res_fixed=0):
    fixed = kkc * cp * 2 + 2 * cp * 4 + res_fixed
    per_row = 2 * kkc * 2 + 2 * cp * out_isz + res_row_bytes
    avail = max(budget - fixed, SUBLANE * per_row)
    cap = max(SUBLANE, (avail // per_row) // SUBLANE * SUBLANE)
    if n_batch == 1 and hw8 >= 2 * SUBLANE:
        cap = min(cap, max(SUBLANE, (hw8 // 2) // SUBLANE * SUBLANE))
    t = min(hw8, cap)
    t -= t % SUBLANE
    t = max(t, SUBLANE)
    while hw8 % t:
        t -= SUBLANE
    return t


def _conv_slab(taps, w, b, *, relu, out_dtype, limit, budget,
               res_taps=None, res_w=None, res_b=None, res_add=None):
    """Fallback conv: one deep matmul per spatial tile over an im2col slab."""
    N, hw8, kkc = taps.shape
    cp = w.shape[-1]
    out_isz = np.dtype(out_dtype).itemsize
    res_row, res_fixed = 0, 0
    if res_taps is not None:
        res_row = 2 * res_taps.shape[-1] * res_taps.dtype.itemsize
        res_fixed = int(res_w.size) * res_w.dtype.itemsize + cp * 4
    elif res_add is not None:
        res_row = 2 * cp * res_add.dtype.itemsize
    T = _slab_tile_m(hw8, kkc, cp, budget=budget, n_batch=N, out_isz=out_isz,
                     res_row_bytes=res_row, res_fixed=res_fixed)
    grid = (N, hw8 // T)

    in_specs = [
        pl.BlockSpec((1, T, kkc), lambda n, h: (n, h, 0)),
        _spec((kkc, cp), lambda n, h: (0, 0), buffers=1),
        _spec((1, cp), lambda n, h: (0, 0), buffers=1),
    ]
    args = [taps, w, b]
    flops = 2 * N * hw8 * kkc * cp

    if res_taps is not None:
        cr = res_taps.shape[-1]
        kernel = functools.partial(_slab_res_mm_kernel, relu=relu)
        in_specs += [
            pl.BlockSpec((1, T, cr), lambda n, h: (n, h, 0)),
            _spec((cr, cp), lambda n, h: (0, 0), buffers=1),
            _spec((1, cp), lambda n, h: (0, 0), buffers=1),
        ]
        args += [res_taps, res_w, res_b]
        flops += 2 * N * hw8 * cr * cp
    elif res_add is not None:
        kernel = functools.partial(_slab_res_add_kernel, relu=relu)
        in_specs.append(pl.BlockSpec((1, T, cp), lambda n, h: (n, h, 0)))
        args.append(res_add)
    else:
        kernel = functools.partial(_slab_conv_kernel, relu=relu)

    out_shape = jax.ShapeDtypeStruct((N, hw8, cp), out_dtype)
    bytes_accessed = sum(int(a.size) * a.dtype.itemsize for a in args)
    bytes_accessed += N * hw8 * cp * out_isz

    return pl.pallas_call(
        kernel, grid=grid, in_specs=in_specs,
        out_specs=pl.BlockSpec((1, T, cp), lambda n, h: (n, h, 0)),
        out_shape=out_shape,
        compiler_params=pltpu.CompilerParams(
            dimension_semantics=("parallel", "parallel"),
            vmem_limit_bytes=limit),
        cost_estimate=pl.CostEstimate(flops=int(flops), transcendentals=0,
                                      bytes_accessed=int(bytes_accessed)),
    )(*args)


# ------------------------------ DownBlock forward -----------------------------

def down_block_pallas(x_nchw, p):
    stride = int(p['stride'])
    limit, budget = _vmem_limits()
    x = jnp.transpose(x_nchw, (0, 2, 3, 1)).astype(jnp.float32)      # NHWC f32
    N, H, W, Cin = x.shape
    Cout = p['w1'].shape[0]
    Cin_p, Cout_p = _round_up(Cin, LANE), _round_up(Cout, LANE)
    Ho = (H - 1) // stride + 1
    Wo = (W - 1) // stride + 1
    HW = Ho * Wo
    Wp = Wo + 2                                   # padded row pitch for conv2
    Mo2 = _round_up(Ho * Wp, SUBLANE)             # conv2 phantom-row count
    x_bf = x.astype(jnp.bfloat16)                 # single early bf16 cast

    # ---- fold eval-mode BN into conv weights / per-channel biases ------------
    s1, t1 = _fold_bn(*p['bn1'])
    w1_hwio = jnp.transpose(p['w1'], (2, 3, 1, 0)) * s1              # (3,3,Ci,Co)
    b1 = _pad_last(t1.reshape(1, Cout), Cout_p).astype(jnp.float32)
    s2, t2 = _fold_bn(*p['bn2'])
    w2_hwio = jnp.transpose(p['w2'], (2, 3, 1, 0)) * s2              # (3,3,Co,Co)
    w2_9 = jnp.pad(w2_hwio.reshape(9, Cout, Cout),
                   ((0, 0), (0, Cout_p - Cout), (0, Cout_p - Cout))
                   ).astype(jnp.bfloat16)
    b2 = _pad_last(t2.reshape(1, Cout), Cout_p).astype(jnp.float32)

    if p['has_downsample']:
        sr, tr = _fold_bn(*p['bn_r'])
        wr = jnp.transpose(p['w_r'][:, :, 0, 0], (1, 0)) * sr        # (Ci,Co)
        wr = jnp.pad(wr, ((0, Cin_p - Cin), (0, Cout_p - Cout))).astype(jnp.bfloat16)
        br = _pad_last((p['b_r'] * sr + tr).reshape(1, Cout),
                       Cout_p).astype(jnp.float32)
        res_row_bytes = 2 * Cin_p * 2
        res_fixed = Cin_p * Cout_p * 2 + 2 * Cout_p * 4
    else:
        res_row_bytes = 2 * Cout_p * 4            # identity residual kept in f32
        res_fixed = 0

    # ---------------------------------- conv1 ---------------------------------
    if stride == 1:
        mo1 = _round_up(H * (W + 2), SUBLANE)
        mp1 = _round_up(mo1 + 2 * (W + 2) + 2, SUBLANE)
        fused1 = _fused_fits(mo1, mp1, Cin_p, Cout_p, 2, budget)
    else:
        fused1 = False

    if fused1:
        x_fp1, wp1, mo1 = _fp_pack(x_bf, Cin_p)
        mask1 = _row_mask(Ho, Wo, wp1, mo1)
        w1_9 = jnp.pad(w1_hwio.reshape(9, Cin, Cout),
                       ((0, 0), (0, Cin_p - Cin), (0, Cout_p - Cout))
                       ).astype(jnp.bfloat16)
        y1_ph = _conv_fused(x_fp1, w1_9, b1, mask1, wp1,
                            relu=True, out_dtype=jnp.bfloat16, limit=limit)
    else:
        kkc1 = _round_up(9 * Cin, LANE)
        w1s = jnp.pad(w1_hwio.reshape(9 * Cin, Cout),
                      ((0, kkc1 - 9 * Cin), (0, Cout_p - Cout))).astype(jnp.bfloat16)
        taps1, _ = _im2col(x_bf, 3, stride, 1)                       # bf16 slab
        HW8 = _round_up(HW, SUBLANE)
        taps1 = jnp.pad(taps1, ((0, 0), (0, HW8 - HW), (0, kkc1 - 9 * Cin)))
        y1_cp = _conv_slab(taps1, w1s, b1, relu=True, out_dtype=jnp.bfloat16,
                           limit=limit, budget=budget)

    # -------------------------- conv2 (+ fused residual) ----------------------
    mp2 = _round_up(Mo2 + 2 * Wp + 2, SUBLANE)
    fused2 = _fused_fits(Mo2, mp2, Cout_p, Cout_p, 4, budget,
                         res_row_bytes=res_row_bytes, res_fixed=res_fixed)

    if fused2:
        if fused1:
            x_fp2, _ = _fp_from_phantom(y1_ph, Ho, Wp)               # no slab, no repack
        else:
            y1_img = y1_cp[:, :HW].reshape(N, Ho, Wo, Cout_p)        # keep Cout_p lanes
            x_fp2, _, _ = _fp_pack(y1_img, Cout_p)
        mask2 = _row_mask(Ho, Wo, Wp, Mo2)
        if p['has_downsample']:
            x_s = x_bf[:, ::stride, ::stride, :][:, :Ho, :Wo, :]
            xr = _phantom_img(x_s, Cin_p, Wp, Mo2)
            out = _conv_fused(x_fp2, w2_9, b2, mask2, Wp,
                              relu=True, out_dtype=jnp.float32, limit=limit,
                              res_x=xr, res_w=wr, res_b=br)
        else:
            res = _phantom_img(x, Cout_p, Wp, Mo2)                   # f32 identity
            out = _conv_fused(x_fp2, w2_9, b2, mask2, Wp,
                              relu=True, out_dtype=jnp.float32, limit=limit,
                              res_add=res)
        out = out[:, :Ho * Wp].reshape(N, Ho, Wp, Cout_p)[:, :, :Wo, :Cout]
    else:
        # TODO(synk): band-tile the padded image with halos instead of falling
        # back to the HBM im2col slab when the whole image exceeds VMEM.
        if fused1:
            y1_img = y1_ph[:, :Ho * Wp].reshape(N, Ho, Wp, Cout_p)[:, :, :Wo]
        else:
            y1_img = y1_cp[:, :HW].reshape(N, Ho, Wo, Cout_p)
        taps2, _ = _im2col(y1_img, 3, 1, 1)                          # (N,HW,9*Co_p)
        HW8 = _round_up(HW, SUBLANE)
        taps2 = jnp.pad(taps2, ((0, 0), (0, HW8 - HW), (0, 0)))
        w2s = w2_9.reshape(9 * Cout_p, Cout_p)
        if p['has_downsample']:
            x_s = x_bf[:, ::stride, ::stride, :][:, :Ho, :Wo, :].reshape(N, HW, Cin)
            x_s = jnp.pad(x_s, ((0, 0), (0, HW8 - HW), (0, Cin_p - Cin)))
            out = _conv_slab(taps2, w2s, b2, relu=True, out_dtype=jnp.float32,
                             limit=limit, budget=budget,
                             res_taps=x_s, res_w=wr, res_b=br)
        else:
            res = jnp.pad(x.reshape(N, HW, Cin),
                          ((0, 0), (0, HW8 - HW), (0, Cout_p - Cin)))
            out = _conv_slab(taps2, w2s, b2, relu=True, out_dtype=jnp.float32,
                             limit=limit, budget=budget, res_add=res)
        out = out[:, :HW].reshape(N, Ho, Wo, Cout_p)[..., :Cout]

    return jnp.transpose(out, (0, 3, 1, 2))                          # NCHW


# ------------------------------ pure-JAX reference ----------------------------

def down_block_reference(x_nchw, p):
    eps = 1e-5
    stride = p['stride']
    x = jnp.transpose(x_nchw, (0, 2, 3, 1)).astype(jnp.float32)

    def bn(z, prm):
        g, b, m, v = prm
        return (z - m) / jnp.sqrt(v + eps) * g + b

    def conv(z, w_oihw, s, pad):
        w = jnp.transpose(w_oihw, (2, 3, 1, 0))                      # HWIO
        return jax.lax.conv_general_dilated(
            z, w, window_strides=(s, s), padding=[(pad, pad)] * 2,
            dimension_numbers=('NHWC', 'HWIO', 'NHWC'))

    y = jax.nn.relu(bn(conv(x, p['w1'], stride, 1), p['bn1']))
    y = jax.nn.relu(bn(conv(y, p['w2'], 1, 1), p['bn2']))
    if p['has_downsample']:
        res = bn(conv(x, p['w_r'], stride, 0) + p['b_r'], p['bn_r'])
    else:
        res = x
    return jnp.transpose(y + res, (0, 3, 1, 2))


# ------------------------------ deterministic params --------------------------

def init_params(key, n_input, n_output, stride):
    ks = jax.random.split(key, 8)

    def bn_params(k):
        kg, kb, km, kv = jax.random.split(k, 4)
        return (jax.random.uniform(kg, (n_output,), jnp.float32, 0.5, 1.5),
                jax.random.uniform(kb, (n_output,), jnp.float32, -0.5, 0.5),
                jax.random.uniform(km, (n_output,), jnp.float32, -0.5, 0.5),
                jax.random.uniform(kv, (n_output,), jnp.float32, 0.5, 1.5))

    p = {
        'stride': stride,
        'has_downsample': (stride != 1 or n_input != n_output),
        'w1': jax.random.normal(ks[0], (n_output, n_input, 3, 3),
                                jnp.float32) / np.sqrt(n_input * 9),
        'bn1': bn_params(ks[1]),
        'w2': jax.random.normal(ks[2], (n_output, n_output, 3, 3),
                                jnp.float32) / np.sqrt(n_output * 9),
        'bn2': bn_params(ks[3]),
    }
    if p['has_downsample']:
        p['w_r'] = (jax.random.normal(ks[4], (n_output, n_input, 1, 1),
                                      jnp.float32) / np.sqrt(n_input))
        p['b_r'] = jax.random.normal(ks[5], (n_output,), jnp.float32) * 0.1
        p['bn_r'] = bn_params(ks[6])
    return p


# ------------------------------------ main ------------------------------------

if __name__ == "__main__":
    key = jax.random.PRNGKey(0)
    k_x, k_p, k2_x, k2_p = jax.random.split(key, 4)

    # Case 1: stride=2, Cin != Cout -> downsample (1x1 conv + BN) residual path.
    n_input, n_output, stride = 4, 8, 2
    N, H, W = 2, 16, 16
    x = jax.random.normal(k_x, (N, n_input, H, W), jnp.float32)
    params = init_params(k_p, n_input, n_output, stride)

    out = jax.block_until_ready(down_block_pallas(x, params))
    ref = jax.block_until_ready(down_block_reference(x, params))
    assert out.shape == (N, n_output, H // stride, W // stride), out.shape
    np.testing.assert_allclose(np.asarray(out), np.asarray(ref),
                               rtol=3e-2, atol=3e-2)

    # Case 2: stride=1, Cin == Cout -> identity residual path.
    x2 = jax.random.normal(k2_x, (N, n_output, H, W), jnp.float32)
    params2 = init_params(k2_p, n_output, n_output, 1)
    out2 = jax.block_until_ready(down_block_pallas(x2, params2))
    ref2 = jax.block_until_ready(down_block_reference(x2, params2))
    assert out2.shape == (N, n_output, H, W), out2.shape
    np.testing.assert_allclose(np.asarray(out2), np.asarray(ref2),
                               rtol=3e-2, atol=3e-2)

    print("KERNEL_OK")
</pallas_src>

<mosaic_0001>
module attributes {stable_mosaic.version = 11 : i64} {
  func.func @_slab_conv_kernel(%arg0: i32, %arg1: i32, %arg2: memref<1x64x128xbf16, #tpu.memory_space<vmem>>, %arg3: memref<128x128xbf16, #tpu.memory_space<vmem>>, %arg4: memref<1x128xf32, #tpu.memory_space<vmem>>, %arg5: memref<1x64x128xbf16, #tpu.memory_space<vmem>>) attributes {dimension_semantics = [#tpu.dimension_semantics<parallel>, #tpu.dimension_semantics<parallel>], iteration_bounds = array<i64: 2, 1>, scalar_prefetch = 0 : i64, scratch_operands = 0 : i64, tpu.core_type = #tpu.core_type<tc>, window_params = [{transform_indices = @transform_0, window_bounds = array<i64: 1, 64, 128>}, {pipeline_mode = #tpu.pipeline_mode<synchronous>, transform_indices = @transform_1, window_bounds = array<i64: 128, 128>}, {pipeline_mode = #tpu.pipeline_mode<synchronous>, transform_indices = @transform_2, window_bounds = array<i64: 1, 128>}, {transform_indices = @transform_3, window_bounds = array<i64: 1, 64, 128>}]} {
    %c0 = arith.constant 0 : index
    %c0_0 = arith.constant 0 : index
    %c0_1 = arith.constant 0 : index
    %0 = vector.load %arg2[%c0, %c0_0, %c0_1] : memref<1x64x128xbf16, #tpu.memory_space<vmem>>, vector<1x64x128xbf16>
    %1 = vector.shape_cast %0 : vector<1x64x128xbf16> to vector<64x128xbf16>
    %c0_2 = arith.constant 0 : index
    %c0_3 = arith.constant 0 : index
    %2 = vector.load %arg3[%c0_2, %c0_3] : memref<128x128xbf16, #tpu.memory_space<vmem>>, vector<128x128xbf16>
    %cst = arith.constant dense<0.000000e+00> : vector<64x128xf32>
    %3 = tpu.matmul %1, %2, %cst {dimension_numbers = #tpu.dot_dimension_numbers<[1], [0], [0], [1], [0, 0, 1, 1], [], []>} : vector<64x128xbf16>, vector<128x128xbf16>, vector<64x128xf32> -> vector<64x128xf32>
    %c0_4 = arith.constant 0 : index
    %c0_5 = arith.constant 0 : index
    %4 = vector.load %arg4[%c0_4, %c0_5] : memref<1x128xf32, #tpu.memory_space<vmem>>, vector<1x128xf32>
    %5 = vector.broadcast %4 : vector<1x128xf32> to vector<64x128xf32>
    %6 = arith.addf %3, %5 : vector<64x128xf32>
    %cst_6 = arith.constant 0.000000e+00 : f32
    %7 = vector.broadcast %cst_6 : f32 to vector<64x128xf32>
    %8 = arith.maximumf %6, %7 : vector<64x128xf32>
    %9 = arith.truncf %8 : vector<64x128xf32> to vector<64x128xbf16>
    %c0_7 = arith.constant 0 : index
    %c0_8 = arith.constant 0 : index
    %c0_9 = arith.constant 0 : index
    %10 = vector.load %arg5[%c0_7, %c0_8, %c0_9] : memref<1x64x128xbf16, #tpu.memory_space<vmem>>, vector<1x64x128xbf16>
    %11 = vector.shape_cast %10 : vector<1x64x128xbf16> to vector<64x128xbf16>
    %12 = vector.shape_cast %9 : vector<64x128xbf16> to vector<1x64x128xbf16>
    tpu.vector_store %arg5[%c0_7, %c0_8, %c0_9], %12 {strides = array<i32>} : memref<1x64x128xbf16, #tpu.memory_space<vmem>>, vector<1x64x128xbf16>,
    return
  }
  func.func @transform_0(%arg0: i32, %arg1: i32) -> (i32, i32, i32) {
    %c0_i32 = arith.constant 0 : i32
    %c0_i32_0 = arith.constant 0 : i32
    return %arg0, %arg1, %c0_i32 : i32, i32, i32
  }
  func.func @transform_1(%arg0: i32, %arg1: i32) -> (i32, i32) {
    %c0_i32 = arith.constant 0 : i32
    %c0_i32_0 = arith.constant 0 : i32
    %c0_i32_1 = arith.constant 0 : i32
    return %c0_i32, %c0_i32_0 : i32, i32
  }
  func.func @transform_2(%arg0: i32, %arg1: i32) -> (i32, i32) {
    %c0_i32 = arith.constant 0 : i32
    %c0_i32_0 = arith.constant 0 : i32
    %c0_i32_1 = arith.constant 0 : i32
    return %c0_i32, %c0_i32_0 : i32, i32
  }
  func.func @transform_3(%arg0: i32, %arg1: i32) -> (i32, i32, i32) {
    %c0_i32 = arith.constant 0 : i32
    %c0_i32_0 = arith.constant 0 : i32
    return %arg0, %arg1, %c0_i32 : i32, i32, i32
  }
}

</mosaic_0001>

<llo_original>
// kernel: tpu_custom_call.1
$region0: #{tpu_custom_call.1}
  #allocation0 [shape = 'u32[]', space=smem, size = 0x4, offset = 0x4, fixed_abs, tag = 'smem constant byte address 0x4 - core index']
  #allocation1 [shape = 'u32[72,128]{1,0:T(1,128)}', space=vmem, size = 0x9000, scoped, tag = 'internal scratch']
  %s0 = inlined_call_operand.hbm [shape: bf16[2,64,128], index: 0, kind: input, shape index: {}]
  %s1 = inlined_call_operand.hbm [shape: bf16[128,128], index: 1, kind: input, shape index: {}]
  %s2 = inlined_call_operand.vmem [shape: f32[1,128], index: 2, kind: input, shape index: {}]
  %s3 = inlined_call_operand.hbm [shape: bf16[2,64,128], index: 3, kind: output, shape index: {}]
  %s4 = sld [smem:[#allocation0]]
  $region53: #{tpu_custom_call.1} parent=0
    _
  %s6 = ssub.s32 1, %s4
  %s7 = scalar_select 0, %s6, %s4
  $region1: #{tpu_custom_call.1} parent=0
    #allocation2 [shape = 'u8[32768]{0}', space=vmem, size = 0x8000, scoped, tag = 'input window, operand 0']
    #allocation3 [shape = 's32[2]{0}', space=sflag, size = 0x8, scoped, tag = 'scoped memory for tpu_custom_call.1']
    #allocation4 [shape = 's32[2]{0}', space=sflag, size = 0x8, scoped, tag = 'scoped memory for tpu_custom_call.1']
    #allocation5 [shape = 'u8[32768]{0}', space=vmem, size = 0x8000, scoped, tag = 'input window, operand 1, single buffered']
    #allocation6 [shape = 's32[1]{0}', space=sflag, size = 0x4, scoped, tag = 'scoped memory for tpu_custom_call.1']
    #allocation7 [shape = 'u8[32768]{0}', space=vmem, size = 0x8000, scoped, tag = 'output window, operand 0']
    %8 = vsyncpa [#allocation3], 0
    %s9 = scalar_lea.sflag [#allocation3], 1
    %10 = vsyncpa %s9, 0
    %11 = vsyncpa [#allocation6], 0
    %12 = vsyncpa [#allocation4], 0
    %s13 = scalar_lea.sflag [#allocation4], 1
    %14 = vsyncpa %s13, 0
    loop: start=0, step=1, limit=4
    $region2: #{tpu_custom_call.1} parent=1 // loop_pre_header
      _
    $region3: #{tpu_custom_call.1} parent=1 // loop_header
      %s16 = sphi 0, %s20
      %p17 = scmp.ge.s32.totalorder %s16, 4
      %s23 = sphi 0, %s35
      %s24 = sphi 0, %s31
      %s25 = sphi 0, %s23
      %s26 = sphi 0, %s24
      %s27 = sphi 0, %s25
      %s28 = sphi 0, %s26
      %s40 = sphi 0, %s42
      %s43 = sphi 0, %s40
      %s44 = sphi 0, %s43
      %s60 = sphi 0, %s44
      %s64 = sphi 0, %s64
      %s66 = sphi 0, %s64
      %s67 = sphi 0, %s66
      %s81 = sphi 0, %s67
      %s85 = sphi 0, %s85
      %s87 = sphi 0, %s85
      %s88 = sphi 0, %s87
      %s102 = sphi 0, %s88
      %s110 = sphi 0, %s112
      %s113 = sphi 0, %s110
      %s114 = sphi 0, %s113
      %s130 = sphi 0, %s114
    $region4: #{tpu_custom_call.1} parent=1 // loop_header_branch
      %19 = sbr.rel (%p17) target = $region8
    $region5: #{tpu_custom_call.1} parent=1 // loop_body
      %s21 = ssub.s32 %s16, 1
      %s22 = ssub.s32 %s16, 2
      %s29 = sadd.s32 1, %s24
      %p30 = scmp.ge.s32.totalorder %s29, 1
      %s31 = scalar_select %p30, 0, %s29
      %s32 = sadd.s32 1, %s23
      %s33 = scalar_select %p30, %s32, %s23
      %p34 = scmp.ge.s32.totalorder %s33, 2
      %s35 = scalar_select %p34, 0, %s33
      %s36 = ssub.s32 %s23, %s35
      %s37 = ssub.s32 %s24, %s31
      %s38 = sor.u32 %s36, %s37
      %p39 = scmp.eq.s32.totalorder %s38, 0
      %s41 = sadd.s32 %s40, 1
      %s42 = scalar_select %p39, %s40, %s41
      %p45 = pneg %p39
      %p46 = scmp.eq.s32.totalorder %s16, 1
      %p47 = por %p45, %p46
      %p48 = scmp.ne.s32.totalorder %s40, %s43
      %p49 = scmp.eq.s32.totalorder %s16, 0
      %p50 = por %p48, %p49
      %p51 = scmp.ne.s32.totalorder %s40, %s43
      %p52 = scmp.eq.s32.totalorder %s21, 1
      %p53 = por %p51, %p52
      %p54 = scmp.ne.s32.totalorder %s43, %s44
      %p55 = scmp.eq.s32.totalorder %s21, 0
      %p56 = por %p54, %p55
      %p57 = scmp.ne.s32.totalorder %s43, %s44
      %p58 = scmp.eq.s32.totalorder %s22, 1
      %p59 = por %p57, %p58
      %p61 = scmp.ne.s32.totalorder %s44, %s60
      %p62 = scmp.eq.s32.totalorder %s22, 0
      %p63 = por %p61, %p62
      %s65 = sadd.s32 %s64, 1
      %p68 = scmp.eq.s32.totalorder %s16, 1
      %p69 = scmp.ne.s32.totalorder %s64, %s66
      %p70 = scmp.eq.s32.totalorder %s16, 0
      %p71 = por %p69, %p70
      %p72 = scmp.ne.s32.totalorder %s64, %s66
      %p73 = scmp.eq.s32.totalorder %s21, 1
      %p74 = por %p72, %p73
      %p75 = scmp.ne.s32.totalorder %s66, %s67
      %p76 = scmp.eq.s32.totalorder %s21, 0
      %p77 = por %p75, %p76
      %p78 = scmp.ne.s32.totalorder %s66, %s67
      %p79 = scmp.eq.s32.totalorder %s22, 1
      %p80 = por %p78, %p79
      %p82 = scmp.ne.s32.totalorder %s67, %s81
      %p83 = scmp.eq.s32.totalorder %s22, 0
      %p84 = por %p82, %p83
      %s86 = sadd.s32 %s85, 1
      %p89 = scmp.eq.s32.totalorder %s16, 1
      %p90 = scmp.ne.s32.totalorder %s85, %s87
      %p91 = scmp.eq.s32.totalorder %s16, 0
      %p92 = por %p90, %p91
      %p93 = scmp.ne.s32.totalorder %s85, %s87
      %p94 = scmp.eq.s32.totalorder %s21, 1
      %p95 = por %p93, %p94
      %p96 = scmp.ne.s32.totalorder %s87, %s88
      %p97 = scmp.eq.s32.totalorder %s21, 0
      %p98 = por %p96, %p97
      %p99 = scmp.ne.s32.totalorder %s87, %s88
      %p100 = scmp.eq.s32.totalorder %s22, 1
      %p101 = por %p99, %p100
      %p103 = scmp.ne.s32.totalorder %s88, %s102
      %p104 = scmp.eq.s32.totalorder %s22, 0
      %p105 = por %p103, %p104
      %s106 = ssub.s32 %s23, %s35
      %s107 = ssub.s32 %s24, %s31
      %s108 = sor.u32 %s106, %s107
      %p109 = scmp.eq.s32.totalorder %s108, 0
      %s111 = sadd.s32 %s110, 1
      %s112 = scalar_select %p109, %s110, %s111
      %p115 = pneg %p109
      %p116 = scmp.eq.s32.totalorder %s16, 1
      %p117 = por %p115, %p116
      %p118 = scmp.ne.s32.totalorder %s110, %s113
      %p119 = scmp.eq.s32.totalorder %s16, 0
      %p120 = por %p118, %p119
      %p121 = scmp.ne.s32.totalorder %s110, %s113
      %p122 = scmp.eq.s32.totalorder %s21, 1
      %p123 = por %p121, %p122
      %p124 = scmp.ne.s32.totalorder %s113, %s114
      %p125 = scmp.eq.s32.totalorder %s21, 0
      %p126 = por %p124, %p125
      %p127 = scmp.ne.s32.totalorder %s113, %s114
      %p128 = scmp.eq.s32.totalorder %s22, 1
      %p129 = por %p127, %p128
      %p131 = scmp.ne.s32.totalorder %s114, %s130
      %p132 = scmp.eq.s32.totalorder %s22, 0
      %p133 = por %p131, %p132
      %p134 = scmp.le.s32.totalorder 1, %s16
      %p135 = scmp.lt.s32.totalorder %s16, 3
      %p136 = pnand %p134, %p135
      %p137 = pneg %p136
      // Predicated region
      $region9: #{tpu_custom_call.1} parent=5 // pred_check
        _
      $region10: #{tpu_custom_call.1} parent=5 // pred_check_branch
        %139 = sbr.rel (%p136) target = $region12
      $region11: #{tpu_custom_call.1} parent=5 // pred_region
        %s140 = ssub.s32 %s16, 1
        // Predicated region
        $region13: #{tpu_custom_call.1} parent=11 // pred_check
          %p141 = pneg %p77
        $region14: #{tpu_custom_call.1} parent=11 // pred_check_branch
          %143 = sbr.rel (%p141) target = $region16
        $region15: #{tpu_custom_call.1} parent=11 // pred_region
          %145 = vsyncadd [#allocation6], 0
          %s146 = sshll.u32 %s1, 4
          %s147 = int_to_ptr.hbm [resolvable:$true] %s146
          %s148 = sshll.u32 [#allocation5], 4
          %s149 = int_to_ptr.vmem [resolvable:$true] %s148
          %154 = dma.hbm_to_vmem [thread:$0]  %s147, 1024, %s149, [#allocation6], 64, 64, 4
        $region16: #{tpu_custom_call.1} parent=11 // pred_fallthru
          _
        // Predicated region
        $region17: #{tpu_custom_call.1} parent=11 // pred_check
          %p155 = pneg %p98
        $region18: #{tpu_custom_call.1} parent=11 // pred_check_branch
          %157 = sbr.rel (%p155) target = $region20
        $region19: #{tpu_custom_call.1} parent=11 // pred_region
          _
        $region20: #{tpu_custom_call.1} parent=11 // pred_fallthru
          _
      $region12: #{tpu_custom_call.1} parent=5 // pred_fallthru
        _
      %p158 = scmp.lt.s32.totalorder %s16, 2
      // Predicated region
      $region21: #{tpu_custom_call.1} parent=5 // pred_check
        %p159 = pneg %p158
      $region22: #{tpu_custom_call.1} parent=5 // pred_check_branch
        %161 = sbr.rel (%p159) target = $region24
      $region23: #{tpu_custom_call.1} parent=5 // pred_region
        // Predicated region
        $region25: #{tpu_custom_call.1} parent=23 // pred_check
          %p162 = pneg %p50
        $region26: #{tpu_custom_call.1} parent=23 // pred_check_branch
          %164 = sbr.rel (%p162) target = $region28
        $region27: #{tpu_custom_call.1} parent=23 // pred_region
          %s165 = sand.u32 %s40, 1
          %s166 = scalar_lea.sflag [#allocation3], %s165
          %s167 = sand.u32 %s40, 1
          %s168 = smul.addr %s167, 32
          %s169 = scalar_lea.vmem [#allocation2], %s168
          %s170 = smul.u32 8, %s24
          %172 = vsyncadd %s166, 0
          %s173 = smul.addr %s23, 8
          %s174 = sadd.s32 %s170, %s173
          %s175 = smul.addr %s174, 4
          %s176 = scalar_lea.hbm %s0, %s175
          %s177 = sshll.u32 %s176, 4
          %s178 = int_to_ptr.hbm [resolvable:$true] %s177
          %s179 = sshll.u32 %s169, 4
          %s180 = int_to_ptr.vmem [resolvable:$true] %s179
          %185 = dma.hbm_to_vmem [thread:$0]  %s178, 512, %s180, %s166, 64, 64, 4
        $region28: #{tpu_custom_call.1} parent=23 // pred_fallthru
          _
      $region24: #{tpu_custom_call.1} parent=5 // pred_fallthru
        _
      %p186 = scmp.le.s32.totalorder 1, %s16
      %p187 = scmp.lt.s32.totalorder %s16, 3
      %p188 = pnand %p186, %p187
      %p189 = pneg %p188
      // Predicated region
      $region29: #{tpu_custom_call.1} parent=5 // pred_check
        _
      $region30: #{tpu_custom_call.1} parent=5 // pred_check_branch
        %191 = sbr.rel (%p188) target = $region32
      $region31: #{tpu_custom_call.1} parent=5 // pred_region
        %s192 = ssub.s32 %s16, 1
        %s193 = sand.u32 %s43, 1
        %s194 = scalar_lea.sflag [#allocation3], %s193
        %s195 = sand.u32 %s43, 1
        %s196 = smul.addr %s195, 32
        %s197 = scalar_lea.vmem [#allocation2], %s196
        // Predicated region
        $region33: #{tpu_custom_call.1} parent=31 // pred_check
          %p198 = pneg %p56
        $region34: #{tpu_custom_call.1} parent=31 // pred_check_branch
          %200 = sbr.rel (%p198) target = $region36
        $region35: #{tpu_custom_call.1} parent=31 // pred_region
          %202 = dma.done %s194, 512
        $region36: #{tpu_custom_call.1} parent=31 // pred_fallthru
          _
        // Predicated region
        $region37: #{tpu_custom_call.1} parent=31 // pred_check
          %p203 = pneg %p77
        $region38: #{tpu_custom_call.1} parent=31 // pred_check_branch
          %205 = sbr.rel (%p203) target = $region40
        $region39: #{tpu_custom_call.1} parent=31 // pred_region
          %207 = dma.done [#allocation6], 1024
        $region40: #{tpu_custom_call.1} parent=31 // pred_fallthru
          _
        %s208 = sand.u32 %s43, 1
        %s209 = scalar_lea.sflag [#allocation3], %s208
        %s210 = sand.u32 %s43, 1
        %s211 = smul.addr %s210, 32
        %s212 = scalar_lea.vmem [#allocation2], %s211
        %p213 = pneg %p56
        %p214 = pneg %p53
        %p215 = pneg %p77
        %p216 = pneg %p74
        %p217 = pneg %p98
        %p218 = pneg %p95
        %p219 = pneg %p126
        %p220 = pneg %p123
        %s221 = sand.u32 %s113, 1
        %s222 = scalar_lea.sflag [#allocation4], %s221
        %s223 = sand.u32 %s113, 1
        %s224 = smul.addr %s223, 32
        %s225 = scalar_lea.vmem [#allocation7], %s224
        %s226 = smul.u32 8, %s26
        %s227 = smul.u32 8, %s26
        %v228 = vld [vmem:[%s197] sm:$0xf]
        %v229 = vld [vmem:[%s197 + $0x4] sm:$0xf]
        %v230 = vld [vmem:[%s197 + $0x8] sm:$0xf]
        %v231 = vld [vmem:[%s197 + $0xc] sm:$0xf]
        %v232 = vld [vmem:[%s197 + $0x10] sm:$0xf]
        %v233 = vld [vmem:[%s197 + $0x14] sm:$0xf]
        %v234 = vld [vmem:[%s197 + $0x18] sm:$0xf]
        %v235 = vld [vmem:[%s197 + $0x1c] sm:$0xf]
        %v236 = vld [vmem:[#allocation5] sm:$0xf]
        %v237 = vld [vmem:[#allocation5 + $0x4] sm:$0xf]
        %v238 = vld [vmem:[#allocation5 + $0x8] sm:$0xf]
        %v239 = vld [vmem:[#allocation5 + $0xc] sm:$0xf]
        %v240 = vld [vmem:[#allocation5 + $0x10] sm:$0xf]
        %v241 = vld [vmem:[#allocation5 + $0x14] sm:$0xf]
        %v242 = vld [vmem:[#allocation5 + $0x18] sm:$0xf]
        %v243 = vld [vmem:[#allocation5 + $0x1c] sm:$0xf]
        %v244 = vld [vmem:[#allocation5 + $0x20] sm:$0xf]
        %v245 = vld [vmem:[#allocation5 + $0x24] sm:$0xf]
        %v246 = vld [vmem:[#allocation5 + $0x28] sm:$0xf]
        %v247 = vld [vmem:[#allocation5 + $0x2c] sm:$0xf]
        %v248 = vld [vmem:[#allocation5 + $0x30] sm:$0xf]
        %v249 = vld [vmem:[#allocation5 + $0x34] sm:$0xf]
        %v250 = vld [vmem:[#allocation5 + $0x38] sm:$0xf]
        %v251 = vld [vmem:[#allocation5 + $0x3c] sm:$0xf]
        %v252 = vld [vmem:[%s2] sm:$0x1]
        %v254 = vperm.slane %v252, 0
        %v264 = vunpack.c.l.b16 %v228
        %v265 = vunpack.c.l.b16 %v229
        %v266 = vunpack.c.l.b16 %v230
        %v267 = vunpack.c.l.b16 %v231
        %v268 = vunpack.c.l.b16 %v232
        %v269 = vunpack.c.l.b16 %v233
        %v270 = vunpack.c.l.b16 %v234
        %v271 = vunpack.c.l.b16 %v235
        %v272 = vpack.c.b16 %v265, %v264
        %v273 = vpack.c.b16 %v267, %v266
        %v274 = vpack.c.b16 %v269, %v268
        %v275 = vpack.c.b16 %v271, %v270
        %v296 = vunpack.c.l.b16 %v236
        %v297 = vunpack.c.l.b16 %v237
        %v298 = vunpack.c.l.b16 %v238
        %v299 = vunpack.c.l.b16 %v239
        %v300 = vunpack.c.l.b16 %v240
        %v301 = vunpack.c.l.b16 %v241
        %v302 = vunpack.c.l.b16 %v242
        %v303 = vunpack.c.l.b16 %v243
        %v304 = vunpack.c.l.b16 %v244
        %v305 = vunpack.c.l.b16 %v245
        %v306 = vunpack.c.l.b16 %v246
        %v307 = vunpack.c.l.b16 %v247
        %v308 = vunpack.c.l.b16 %v248
        %v309 = vunpack.c.l.b16 %v249
        %v310 = vunpack.c.l.b16 %v250
        %v311 = vunpack.c.l.b16 %v251
        %v312 = vpack.c.b16 %v297, %v296
        %v313 = vpack.c.b16 %v299, %v298
        %v314 = vpack.c.b16 %v301, %v300
        %v315 = vpack.c.b16 %v303, %v302
        %v316 = vpack.c.b16 %v305, %v304
        %v317 = vpack.c.b16 %v307, %v306
        %v318 = vpack.c.b16 %v309, %v308
        %v319 = vpack.c.b16 %v311, %v310
        %328 = vmatpush.bf16.msra.mxu0 %v319
        %329 = vmatpush.bf16.msra.mxu0 %v318
        %330 = vmatpush.bf16.msra.mxu0 %v317
        %331 = vmatpush.bf16.msra.mxu0 %v316
        %332 = vmatpush.bf16.msra.mxu0 %v315
        %333 = vmatpush.bf16.msra.mxu0 %v314
        %334 = vmatpush.bf16.msra.mxu0 %v313
        %335 = vmatpush.bf16.msra.mxu0 %v312
        %336 = vmatmul.bf16.gmra.mxu0 %v272
        %v337 = vpop.f32.mrf.mxu0
        %v338 = vadd.f32 %v254, %v337
        %v339 = vpop.f32.mrf.mxu0
        %v340 = vadd.f32 %v254, %v339
        %341 = vmatmul.bf16.gmra.mxu0 %v273
        %v342 = vpop.f32.mrf.mxu0
        %v343 = vadd.f32 %v254, %v342
        %v344 = vpop.f32.mrf.mxu0
        %v345 = vadd.f32 %v254, %v344
        %346 = vmatmul.bf16.gmra.mxu0 %v274
        %v347 = vpop.f32.mrf.mxu0
        %v348 = vadd.f32 %v254, %v347
        %v349 = vpop.f32.mrf.mxu0
        %v350 = vadd.f32 %v254, %v349
        %351 = vmatmul.bf16.gmra.mxu0 %v275
        %v352 = vpop.f32.mrf.mxu0
        %v353 = vadd.f32 %v254, %v352
        %v354 = vpop.f32.mrf.mxu0
        %v355 = vadd.f32 %v254, %v354
        %356 = vdwg.mxu0
        %v357 = vmax.f32 %v338, 0.0
        %v358 = vmax.f32 %v340, 0.0
        %v359 = vmax.f32 %v343, 0.0
        %v360 = vmax.f32 %v345, 0.0
        %v361 = vmax.f32 %v348, 0.0
        %v362 = vmax.f32 %v350, 0.0
        %v363 = vmax.f32 %v353, 0.0
        %v364 = vmax.f32 %v355, 0.0
        %v365 = vpack.c.bf16 %v357, %v357
        %v366 = vpack.c.bf16 %v358, %v358
        %v367 = vpack.c.bf16 %v359, %v359
        %v368 = vpack.c.bf16 %v360, %v360
        %v369 = vpack.c.bf16 %v361, %v361
        %v370 = vpack.c.bf16 %v362, %v362
        %v371 = vpack.c.bf16 %v363, %v363
        %v372 = vpack.c.bf16 %v364, %v364
        %373 = vst [vmem:[%s225] sm:$0xf] %v365
        %374 = vst [vmem:[%s225 + $0x4] sm:$0xf] %v366
        %375 = vst [vmem:[%s225 + $0x8] sm:$0xf] %v367
        %376 = vst [vmem:[%s225 + $0xc] sm:$0xf] %v368
        %377 = vst [vmem:[%s225 + $0x10] sm:$0xf] %v369
        %378 = vst [vmem:[%s225 + $0x14] sm:$0xf] %v370
        %379 = vst [vmem:[%s225 + $0x18] sm:$0xf] %v371
        %380 = vst [vmem:[%s225 + $0x1c] sm:$0xf] %v372
        %s381 = sand.u32 %s113, 1
        %s382 = scalar_lea.sflag [#allocation4], %s381
        %s383 = sand.u32 %s113, 1
        %s384 = smul.addr %s383, 32
        %s385 = scalar_lea.vmem [#allocation7], %s384
        // Predicated region
        $region41: #{tpu_custom_call.1} parent=31 // pred_check
          %p386 = pneg %p123
        $region42: #{tpu_custom_call.1} parent=31 // pred_check_branch
          %388 = sbr.rel (%p386) target = $region44
        $region43: #{tpu_custom_call.1} parent=31 // pred_region
          %s389 = smul.u32 8, %s26
          %391 = vsyncadd %s382, 0
          %s392 = smul.addr %s25, 8
          %s393 = sadd.s32 %s389, %s392
          %s394 = smul.addr %s393, 4
          %s395 = scalar_lea.hbm %s3, %s394
          %s396 = sshll.u32 %s385, 4
          %s397 = int_to_ptr.vmem [resolvable:$true] %s396
          %s398 = sshll.u32 %s395, 4
          %s399 = int_to_ptr.hbm [resolvable:$true] %s398
          %404 = dma.vmem_to_hbm [thread:$0]  %s397, 512, %s399, %s382, 64, 64, 4
        $region44: #{tpu_custom_call.1} parent=31 // pred_fallthru
          _
      $region32: #{tpu_custom_call.1} parent=5 // pred_fallthru
        _
      %p405 = scmp.le.s32.totalorder 2, %s16
      // Predicated region
      $region45: #{tpu_custom_call.1} parent=5 // pred_check
        %p406 = pneg %p405
      $region46: #{tpu_custom_call.1} parent=5 // pred_check_branch
        %408 = sbr.rel (%p406) target = $region48
      $region47: #{tpu_custom_call.1} parent=5 // pred_region
        %s409 = ssub.s32 %s16, 2
        // Predicated region
        $region49: #{tpu_custom_call.1} parent=47 // pred_check
          %p410 = pneg %p129
        $region50: #{tpu_custom_call.1} parent=47 // pred_check_branch
          %412 = sbr.rel (%p410) target = $region52
        $region51: #{tpu_custom_call.1} parent=47 // pred_region
          %s413 = sand.u32 %s114, 1
          %s414 = scalar_lea.sflag [#allocation4], %s413
          %s415 = sand.u32 %s114, 1
          %s416 = smul.addr %s415, 32
          %s417 = scalar_lea.vmem [#allocation7], %s416
          %419 = dma.done %s414, 512
        $region52: #{tpu_custom_call.1} parent=47 // pred_fallthru
          _
      $region48: #{tpu_custom_call.1} parent=5 // pred_fallthru
        _
    $region6: #{tpu_custom_call.1} parent=1 // loop_footer
      %s20 = sadd.s32 1, %s16
    $region7: #{tpu_custom_call.1} parent=1 // loop_footer_branch
      %15 = sbr.rel target = $region3
    $region8: #{tpu_custom_call.1} parent=1 // loop_exit
      _
    %420 = vsyncpa [#allocation3], 1
    %s421 = scalar_lea.sflag [#allocation3], 1
    %422 = vsyncpa %s421, 1
    %423 = vsyncpa [#allocation6], 1
    %424 = vsyncpa [#allocation4], 1
    %s425 = scalar_lea.sflag [#allocation4], 1
    %426 = vsyncpa %s425, 1

</llo_original>
